<compile_context>
chip_gen: v5e
topology: v5e:2x2
jax: 0.10.0
libtpu: 0.0.40
codegen_flags: <defaults>
</compile_context>

<pallas_src>
import functools
import math
from typing import NamedTuple, Optional

import jax
import jax.numpy as jnp
from jax import lax
from jax.experimental import pallas as pl
from jax.experimental.pallas import tpu as pltpu

_LANE = 128


def _round_up(x: int, m: int) -> int:
    return ((x + m - 1) // m) * m


def _sublane_multiple(dtype) -> int:
    # f32 -> 8, bf16/f16 -> 16, int8/fp8 -> 32 (packed sublanes)
    return max(8, 32 // jnp.dtype(dtype).itemsize)


_ACTIVATIONS = {
    "none": None,
    "relu": lambda v: jnp.maximum(v, 0.0),
    # PyTorch nn.GELU default is exact erf, not the tanh approximation.
    "gelu": lambda v: jax.nn.gelu(v, approximate=False),
}


def _resolve_activation(activation):
    if activation is None:
        return None
    if isinstance(activation, str):
        key = activation.lower()
        if key in _ACTIVATIONS:
            return _ACTIVATIONS[key]
        raise ValueError(f"Unsupported activation string: {activation!r}")
    if callable(activation):
        # Any jax-traceable elementwise callable is fused into the epilogue.
        return activation
    raise ValueError(f"Unsupported activation: {activation!r}")


# ----------------------------------------------------------------------------
# Kernels
# ----------------------------------------------------------------------------

def _dot(x_ref, w_ref):
    # x: [tm, tk], w: [tk, tn]  (weight pre-transposed to (K, N) at prep time)
    return lax.dot_general(
        x_ref[...], w_ref[...],
        dimension_numbers=(((1,), (0,)), ((), ())),
        preferred_element_type=jnp.float32,
    )


def _epilogue(acc_f32, b_ref, o_ref, act_fn):
    out = acc_f32
    if b_ref is not None:
        out = out + b_ref[...].astype(jnp.float32)
    if act_fn is not None:
        out = act_fn(out)
    o_ref[...] = out.astype(o_ref.dtype)


# --- single K block: dot + epilogue straight to o_ref (no accumulator) ------

def _fc_direct_bias(x_ref, w_ref, b_ref, o_ref, *, act_fn):
    _epilogue(_dot(x_ref, w_ref), b_ref, o_ref, act_fn)


def _fc_direct_nobias(x_ref, w_ref, o_ref, *, act_fn):
    _epilogue(_dot(x_ref, w_ref), None, o_ref, act_fn)


# --- tiled K: resident f32 accumulator, finalize on last K step --------------

def _fc_acc_body(x_ref, w_ref, b_ref, o_ref, acc_ref, act_fn):
    k = pl.program_id(2)

    @pl.when(k == 0)
    def _():
        acc_ref[...] = jnp.zeros_like(acc_ref)

    acc_ref[...] += _dot(x_ref, w_ref)

    @pl.when(k == pl.num_programs(2) - 1)
    def _():
        _epilogue(acc_ref[...], b_ref, o_ref, act_fn)


def _fc_acc_bias(x_ref, w_ref, b_ref, o_ref, acc_ref, *, act_fn):
    _fc_acc_body(x_ref, w_ref, b_ref, o_ref, acc_ref, act_fn)


def _fc_acc_nobias(x_ref, w_ref, o_ref, acc_ref, *, act_fn):
    _fc_acc_body(x_ref, w_ref, None, o_ref, acc_ref, act_fn)


# ----------------------------------------------------------------------------
# Parameter preparation (one-time, init cost) and forward wrapper
# ----------------------------------------------------------------------------

class FCParams(NamedTuple):
    w_kn: jax.Array            # (k_pad, n_pad) weight, transposed + padded once
    bias: Optional[jax.Array]  # (1, n_pad) or None
    in_features: int
    out_features: int
    tk: int
    tn: int


def prepare_fc_params(
    weight,
    bias=None,
    *,
    tn: int = 512,
    tk: int = 1024,
    weight_resident_bytes: int = 8 * 1024 * 1024,
) -> FCParams:
    """One-time layout prep for the PyTorch-layout weight (out_features, in_features)."""
    out_features, in_features = weight.shape
    itemsize = jnp.dtype(weight.dtype).itemsize

    k_al = _round_up(in_features, _LANE)
    n_al = _round_up(out_features, _LANE)

    if k_al * n_al * itemsize <= weight_resident_bytes:
        # Small weight: keep the whole (K, N) slab VMEM-resident (single block,
        # constant index_map -> DMA'd once and reused across the entire M grid).
        tk_, tn_ = k_al, n_al
    else:
        tk_ = min(_round_up(tk, _LANE), k_al)
        tn_ = min(_round_up(tn, _LANE), n_al)

    k_pad = _round_up(k_al, tk_)
    n_pad = _round_up(n_al, tn_)

    # (K, N) layout: contraction dim on sublanes, MXU-native, no in-kernel transpose.
    w_kn = jnp.transpose(weight)
    if (k_pad, n_pad) != (in_features, out_features):
        w_kn = jnp.pad(
            w_kn, ((0, k_pad - in_features), (0, n_pad - out_features))
        )

    b2d = None
    if bias is not None:
        b2d = bias.reshape(1, out_features)
        if n_pad != out_features:
            b2d = jnp.pad(b2d, ((0, 0), (0, n_pad - out_features)))

    return FCParams(w_kn, b2d, in_features, out_features, tk_, tn_)


def fc_forward(
    x,
    params: FCParams,
    context=None,        # accepted but unused, as in the PyTorch module
    *,
    activation="none",
    tm: int = 512,
):
    """Pallas equivalent of FC.forward(input, context) (context unused)."""
    del context
    act_fn = _resolve_activation(activation)

    in_features = params.in_features
    out_features = params.out_features
    assert x.shape[-1] == in_features, "last dim of x must be in_features"
    lead_shape = x.shape[:-1]

    x2d = x.reshape(-1, in_features)
    m = x2d.shape[0]
    k_pad, n_pad = params.w_kn.shape
    tk, tn = params.tk, params.tn

    # Pad only the contraction axis of x (often a no-op). The M remainder is
    # handled by a ragged last block instead of materializing a padded copy.
    if k_pad != in_features:
        x2d = jnp.pad(x2d, ((0, 0), (0, k_pad - in_features)))

    sub = _sublane_multiple(x.dtype)
    tm = max(sub, min(_round_up(tm, sub), _round_up(m, sub)))
    nb = n_pad // tn
    kb = k_pad // tk
    mb = pl.cdiv(m, tm)

    # v7x megacore: expose >=2 blocks along the parallel axes for non-trivial
    # shapes so both TensorCores get work (harmless extra grid step elsewhere).
    if mb * nb == 1 and m >= 2 * sub and m * n_pad >= 256 * 256:
        tm = _round_up(-(-m // 2), sub)
        mb = pl.cdiv(m, tm)

    use_bias = params.bias is not None
    operands = [x2d, params.w_kn]

    if kb == 1:
        # Single K block: no accumulator scratch, dot+bias+act written directly.
        grid = (mb, nb)
        in_specs = [
            pl.BlockSpec((tm, tk), lambda i, j: (i, 0)),   # x tile
            pl.BlockSpec((tk, tn), lambda i, j: (0, j)),   # weight (resident if nb==1)
        ]
        out_spec = pl.BlockSpec((tm, tn), lambda i, j: (i, j))
        b_spec = pl.BlockSpec((1, tn), lambda i, j: (0, j))
        scratch = []
        kernel = functools.partial(
            _fc_direct_bias if use_bias else _fc_direct_nobias, act_fn=act_fn
        )
        dim_sem = ("parallel", "parallel")
    else:
        grid = (mb, nb, kb)
        in_specs = [
            pl.BlockSpec((tm, tk), lambda i, j, k: (i, k)),
            pl.BlockSpec((tk, tn), lambda i, j, k: (k, j)),
        ]
        out_spec = pl.BlockSpec((tm, tn), lambda i, j, k: (i, j))
        b_spec = pl.BlockSpec((1, tn), lambda i, j, k: (0, j))
        scratch = [pltpu.VMEM((tm, tn), jnp.float32)]
        kernel = functools.partial(
            _fc_acc_bias if use_bias else _fc_acc_nobias, act_fn=act_fn
        )
        dim_sem = ("parallel", "parallel", "arbitrary")

    if use_bias:
        operands.append(params.bias)
        in_specs.append(b_spec)

    # Rough VMEM footprint (double-buffered tiles + accumulator). Only raise the
    # scoped limit when we exceed the 32 MiB default; default tiles stay below it.
    # TODO(synk): on v7x (64 MiB VMEM) keep this estimate under ~48 MiB when sweeping tiles.
    x_item = jnp.dtype(x.dtype).itemsize
    w_item = jnp.dtype(params.w_kn.dtype).itemsize
    vmem_est = 2 * (tm * tk * x_item + tk * tn * w_item + tm * tn * x_item)
    if use_bias:
        vmem_est += 2 * tn * jnp.dtype(params.bias.dtype).itemsize
    if kb > 1:
        vmem_est += tm * tn * 4
    compiler_kwargs = dict(dimension_semantics=dim_sem)
    if vmem_est > (32 << 20):
        compiler_kwargs["vmem_limit_bytes"] = int(vmem_est + (4 << 20))

    flops = 2 * m * k_pad * n_pad
    bytes_accessed = (
        x2d.size * x_item
        + params.w_kn.size * w_item
        + (params.bias.size * jnp.dtype(params.bias.dtype).itemsize if use_bias else 0)
        + m * n_pad * x_item
    )
    cost = pl.CostEstimate(
        flops=int(flops),
        transcendentals=int(m * n_pad) if act_fn is not None else 0,
        bytes_accessed=int(bytes_accessed),
    )

    out2d = pl.pallas_call(
        kernel,
        out_shape=jax.ShapeDtypeStruct((m, n_pad), x.dtype),
        grid_spec=pltpu.PrefetchScalarGridSpec(
            num_scalar_prefetch=0,
            grid=grid,
            in_specs=in_specs,
            out_specs=out_spec,
            scratch_shapes=scratch,
        ),
        compiler_params=pltpu.CompilerParams(**compiler_kwargs),
        cost_estimate=cost,
    )(*operands)

    if n_pad != out_features:
        out2d = out2d[:, :out_features]
    return out2d.reshape(*lead_shape, out_features)


def fc_forward_torch_layout(x, weight, bias=None, context=None, *,
                            activation="none", **kwargs):
    """Convenience one-shot matching FC.forward with PyTorch-layout weight.

    Prefer prepare_fc_params(...) once at init + fc_forward(...) per call so the
    weight transpose/pad is not paid on every forward.
    """
    params = prepare_fc_params(weight, bias)
    return fc_forward(x, params, context, activation=activation, **kwargs)


# ----------------------------------------------------------------------------
# Self-test
# ----------------------------------------------------------------------------

if __name__ == "__main__":
    key = jax.random.PRNGKey(0)
    k_x, k_ctx, k_w, k_b, k_x2, k_w2, k_b2 = jax.random.split(key, 7)

    # FC(in_features=32, out_features=64, context_features=16)
    batch, seq = 2, 8
    in_features, out_features, context_features = 32, 64, 16

    x = jax.random.normal(k_x, (batch, seq, in_features), jnp.float32)
    context = jax.random.normal(k_ctx, (batch, seq, context_features), jnp.float32)

    bound = 1.0 / math.sqrt(in_features)
    weight = jax.random.uniform(k_w, (out_features, in_features), jnp.float32,
                                -bound, bound)
    bias = jax.random.uniform(k_b, (out_features,), jnp.float32, -bound, bound)

    params = prepare_fc_params(weight, bias)      # one-time init cost
    ref = x @ weight.T + bias

    # activation=None (module default) -- weight-resident, single-K fast path
    out = jax.block_until_ready(fc_forward(x, params, context))
    assert out.shape == (batch, seq, out_features)
    assert jnp.allclose(out, ref, atol=1e-5, rtol=1e-5)

    # optional activation: relu
    out_relu = jax.block_until_ready(fc_forward(x, params, context, activation="relu"))
    assert jnp.allclose(out_relu, jnp.maximum(ref, 0.0), atol=1e-5, rtol=1e-5)

    # optional activation: exact gelu (PyTorch nn.GELU default)
    out_gelu = jax.block_until_ready(fc_forward(x, params, context, activation="gelu"))
    ref_gelu = ref * 0.5 * (1.0 + lax.erf(ref / jnp.sqrt(2.0).astype(jnp.float32)))
    assert jnp.allclose(out_gelu, ref_gelu, atol=1e-5, rtol=1e-5)

    # no-bias variant (separate kernel, no dummy zero-bias DMA)
    params_nb = prepare_fc_params(weight, None)
    out_nb = jax.block_until_ready(fc_forward(x, params_nb, context))
    assert jnp.allclose(out_nb, x @ weight.T, atol=1e-5, rtol=1e-5)

    # bf16 activations/weights with in-kernel f32 accumulation
    xb = x.astype(jnp.bfloat16)
    wb = weight.astype(jnp.bfloat16)
    bb = bias.astype(jnp.bfloat16)
    params_bf = prepare_fc_params(wb, bb)
    out_bf = jax.block_until_ready(fc_forward(xb, params_bf, context))
    ref_bf = xb.astype(jnp.float32) @ wb.astype(jnp.float32).T + bb.astype(jnp.float32)
    assert out_bf.dtype == jnp.bfloat16
    assert jnp.allclose(out_bf.astype(jnp.float32), ref_bf, atol=2e-2, rtol=2e-2)

    # Exercise the general tiled-K accumulator path (force non-resident weight).
    m2, k2, n2 = 128, 384, 256
    x2 = jax.random.normal(k_x2, (m2, k2), jnp.float32)
    w2 = jax.random.uniform(k_w2, (n2, k2), jnp.float32, -0.05, 0.05)
    b2 = jax.random.uniform(k_b2, (n2,), jnp.float32, -0.05, 0.05)
    params2 = prepare_fc_params(w2, b2, tn=128, tk=128, weight_resident_bytes=0)
    out2 = jax.block_until_ready(fc_forward(x2, params2, tm=64))
    ref2 = x2 @ w2.T + b2
    assert jnp.allclose(out2, ref2, atol=1e-2, rtol=1e-2)

    print("KERNEL_OK")
</pallas_src>

<mosaic_0001>
module attributes {stable_mosaic.version = 11 : i64} {
  func.func @_fc_direct_bias(%arg0: i32, %arg1: i32, %arg2: memref<16x128xf32, #tpu.memory_space<vmem>>, %arg3: memref<128x128xf32, #tpu.memory_space<vmem>>, %arg4: memref<1x128xf32, #tpu.memory_space<vmem>>, %arg5: memref<16x128xf32, #tpu.memory_space<vmem>>) attributes {dimension_semantics = [#tpu.dimension_semantics<parallel>, #tpu.dimension_semantics<parallel>], iteration_bounds = array<i64: 1, 1>, scalar_prefetch = 0 : i64, scratch_operands = 0 : i64, tpu.core_type = #tpu.core_type<tc>, window_params = [{transform_indices = @transform_0, window_bounds = array<i64: 16, 128>}, {transform_indices = @transform_1, window_bounds = array<i64: 128, 128>}, {transform_indices = @transform_2, window_bounds = array<i64: 1, 128>}, {transform_indices = @transform_3, window_bounds = array<i64: 16, 128>}]} {
    %c0 = arith.constant 0 : index
    %c0_0 = arith.constant 0 : index
    %0 = vector.load %arg2[%c0, %c0_0] : memref<16x128xf32, #tpu.memory_space<vmem>>, vector<16x128xf32>
    %c0_1 = arith.constant 0 : index
    %c0_2 = arith.constant 0 : index
    %1 = vector.load %arg3[%c0_1, %c0_2] : memref<128x128xf32, #tpu.memory_space<vmem>>, vector<128x128xf32>
    %cst = arith.constant dense<0.000000e+00> : vector<16x128xf32>
    %2 = tpu.matmul %0, %1, %cst {dimension_numbers = #tpu.dot_dimension_numbers<[1], [0], [0], [1], [0, 0, 1, 1], [], []>} : vector<16x128xf32>, vector<128x128xf32>, vector<16x128xf32> -> vector<16x128xf32>
    %c0_3 = arith.constant 0 : index
    %c0_4 = arith.constant 0 : index
    %3 = vector.load %arg4[%c0_3, %c0_4] : memref<1x128xf32, #tpu.memory_space<vmem>>, vector<1x128xf32>
    %4 = vector.broadcast %3 : vector<1x128xf32> to vector<16x128xf32>
    %5 = arith.addf %2, %4 : vector<16x128xf32>
    %c0_5 = arith.constant 0 : index
    %c0_6 = arith.constant 0 : index
    %6 = vector.load %arg5[%c0_5, %c0_6] : memref<16x128xf32, #tpu.memory_space<vmem>>, vector<16x128xf32>
    tpu.vector_store %arg5[%c0_5, %c0_6], %5 {strides = array<i32>} : memref<16x128xf32, #tpu.memory_space<vmem>>, vector<16x128xf32>,
    return
  }
  func.func @transform_0(%arg0: i32, %arg1: i32) -> (i32, i32) {
    %c0_i32 = arith.constant 0 : i32
    %c0_i32_0 = arith.constant 0 : i32
    return %arg0, %c0_i32 : i32, i32
  }
  func.func @transform_1(%arg0: i32, %arg1: i32) -> (i32, i32) {
    %c0_i32 = arith.constant 0 : i32
    %c0_i32_0 = arith.constant 0 : i32
    return %c0_i32, %arg1 : i32, i32
  }
  func.func @transform_2(%arg0: i32, %arg1: i32) -> (i32, i32) {
    %c0_i32 = arith.constant 0 : i32
    %c0_i32_0 = arith.constant 0 : i32
    return %c0_i32, %arg1 : i32, i32
  }
  func.func @transform_3(%arg0: i32, %arg1: i32) -> (i32, i32) {
    %c0_i32 = arith.constant 0 : i32
    return %arg0, %arg1 : i32, i32
  }
}

</mosaic_0001>

<llo_original>
// kernel: tpu_custom_call.1
$region0: #{tpu_custom_call.1}
  #allocation0 [shape = 'u32[]', space=smem, size = 0x4, offset = 0x4, fixed_abs, tag = 'smem constant byte address 0x4 - core index']
  #allocation1 [shape = 'u32[72,128]{1,0:T(1,128)}', space=vmem, size = 0x9000, scoped, tag = 'internal scratch']
  %s0 = inlined_call_operand.hbm [shape: f32[16,128], index: 0, kind: input, shape index: {}]
  %s1 = inlined_call_operand.hbm [shape: f32[128,128], index: 1, kind: input, shape index: {}]
  %s2 = inlined_call_operand.vmem [shape: f32[1,128], index: 2, kind: input, shape index: {}]
  %s3 = inlined_call_operand.hbm [shape: f32[16,128], index: 3, kind: output, shape index: {}]
  %s4 = sld [smem:[#allocation0]]
  $region30: #{tpu_custom_call.1} parent=0
    _
  %s6 = ssub.s32 1, %s4
  %s7 = scalar_select 0, %s6, %s4
  $region1: #{tpu_custom_call.1} parent=0
    #allocation2 [shape = 'u8[8192]{0}', space=vmem, size = 0x2000, scoped, tag = 'input window, operand 0, single buffered']
    #allocation3 [shape = 's32[1]{0}', space=sflag, size = 0x4, scoped, tag = 'scoped memory for tpu_custom_call.1']
    #allocation4 [shape = 's32[1]{0}', space=sflag, size = 0x4, scoped, tag = 'scoped memory for tpu_custom_call.1']
    #allocation5 [shape = 'u8[65536]{0}', space=vmem, size = 0x10000, scoped, tag = 'input window, operand 1, single buffered']
    #allocation6 [shape = 's32[1]{0}', space=sflag, size = 0x4, scoped, tag = 'scoped memory for tpu_custom_call.1']
    #allocation7 [shape = 'u8[8192]{0}', space=vmem, size = 0x2000, scoped, tag = 'output window, operand 0, single buffered']
    %8 = vsyncpa [#allocation3], 0
    %9 = vsyncpa [#allocation6], 0
    %10 = vsyncpa [#allocation4], 0
    // Predicated region
    $region2: #{tpu_custom_call.1} parent=1 // pred_check
      _
    $region3: #{tpu_custom_call.1} parent=1 // pred_check_branch
      %12 = sbr.rel (0) target = $region5
    $region4: #{tpu_custom_call.1} parent=1 // pred_region
      %14 = vsyncadd [#allocation3], 0
      %s15 = sshll.u32 %s0, 4
      %s16 = int_to_ptr.hbm [resolvable:$true] %s15
      %s17 = sshll.u32 [#allocation2], 4
      %s18 = int_to_ptr.vmem [resolvable:$true] %s17
      %23 = dma.hbm_to_vmem [thread:$0]  %s16, 256, %s18, [#allocation3], 128, 128, 8
    $region5: #{tpu_custom_call.1} parent=1 // pred_fallthru
      _
    // Predicated region
    $region6: #{tpu_custom_call.1} parent=1 // pred_check
      _
    $region7: #{tpu_custom_call.1} parent=1 // pred_check_branch
      %25 = sbr.rel (0) target = $region9
    $region8: #{tpu_custom_call.1} parent=1 // pred_region
      %27 = vsyncadd [#allocation6], 0
      %s28 = sshll.u32 %s1, 4
      %s29 = int_to_ptr.hbm [resolvable:$true] %s28
      %s30 = sshll.u32 [#allocation5], 4
      %s31 = int_to_ptr.vmem [resolvable:$true] %s30
      %36 = dma.hbm_to_vmem [thread:$0]  %s29, 2048, %s31, [#allocation6], 128, 128, 8
    $region9: #{tpu_custom_call.1} parent=1 // pred_fallthru
      _
    // Predicated region
    $region10: #{tpu_custom_call.1} parent=1 // pred_check
      _
    $region11: #{tpu_custom_call.1} parent=1 // pred_check_branch
      %38 = sbr.rel (0) target = $region13
    $region12: #{tpu_custom_call.1} parent=1 // pred_region
      _
    $region13: #{tpu_custom_call.1} parent=1 // pred_fallthru
      _
    // Predicated region
    $region14: #{tpu_custom_call.1} parent=1 // pred_check
      _
    $region15: #{tpu_custom_call.1} parent=1 // pred_check_branch
      %40 = sbr.rel (0) target = $region17
    $region16: #{tpu_custom_call.1} parent=1 // pred_region
      %42 = dma.done [#allocation3], 256
    $region17: #{tpu_custom_call.1} parent=1 // pred_fallthru
      _
    // Predicated region
    $region18: #{tpu_custom_call.1} parent=1 // pred_check
      _
    $region19: #{tpu_custom_call.1} parent=1 // pred_check_branch
      %44 = sbr.rel (0) target = $region21
    $region20: #{tpu_custom_call.1} parent=1 // pred_region
      %46 = dma.done [#allocation6], 2048
    $region21: #{tpu_custom_call.1} parent=1 // pred_fallthru
      _
    %v47 = vld [vmem:[#allocation2] sm:$0xff]
    %v48 = vld [vmem:[#allocation2 + $0x8] sm:$0xff]
    %v49 = vld [vmem:[#allocation5] sm:$0xff]
    %v50 = vld [vmem:[#allocation5 + $0x8] sm:$0xff]
    %v51 = vld [vmem:[#allocation5 + $0x10] sm:$0xff]
    %v52 = vld [vmem:[#allocation5 + $0x18] sm:$0xff]
    %v53 = vld [vmem:[#allocation5 + $0x20] sm:$0xff]
    %v54 = vld [vmem:[#allocation5 + $0x28] sm:$0xff]
    %v55 = vld [vmem:[#allocation5 + $0x30] sm:$0xff]
    %v56 = vld [vmem:[#allocation5 + $0x38] sm:$0xff]
    %v57 = vld [vmem:[#allocation5 + $0x40] sm:$0xff]
    %v58 = vld [vmem:[#allocation5 + $0x48] sm:$0xff]
    %v59 = vld [vmem:[#allocation5 + $0x50] sm:$0xff]
    %v60 = vld [vmem:[#allocation5 + $0x58] sm:$0xff]
    %v61 = vld [vmem:[#allocation5 + $0x60] sm:$0xff]
    %v62 = vld [vmem:[#allocation5 + $0x68] sm:$0xff]
    %v63 = vld [vmem:[#allocation5 + $0x70] sm:$0xff]
    %v64 = vld [vmem:[#allocation5 + $0x78] sm:$0xff]
    %v65 = vld [vmem:[%s2] sm:$0x1]
    %v67 = vperm.slane %v65, 0
    %69 = vmatpush.msra.mxu0 %v64
    %70 = vmatpush.msra.mxu0 %v63
    %71 = vmatpush.msra.mxu0 %v62
    %72 = vmatpush.msra.mxu0 %v61
    %73 = vmatpush.msra.mxu0 %v60
    %74 = vmatpush.msra.mxu0 %v59
    %75 = vmatpush.msra.mxu0 %v58
    %76 = vmatpush.msra.mxu0 %v57
    %77 = vmatpush.msra.mxu0 %v56
    %78 = vmatpush.msra.mxu0 %v55
    %79 = vmatpush.msra.mxu0 %v54
    %80 = vmatpush.msra.mxu0 %v53
    %81 = vmatpush.msra.mxu0 %v52
    %82 = vmatpush.msra.mxu0 %v51
    %83 = vmatpush.msra.mxu0 %v50
    %84 = vmatpush.msra.mxu0 %v49
    %85 = vmatmul.f32.gmra.mxu0 %v47
    %v86 = vpop.f32.mrf.mxu0
    %v87 = vadd.f32 %v67, %v86
    %88 = vmatmul.f32.gmra.mxu0 %v48
    %v89 = vpop.f32.mrf.mxu0
    %v90 = vadd.f32 %v67, %v89
    %91 = vdwg.mxu0
    %92 = vst [vmem:[#allocation7] sm:$0xff] %v87
    %93 = vst [vmem:[#allocation7 + $0x8] sm:$0xff] %v90
    // Predicated region
    $region22: #{tpu_custom_call.1} parent=1 // pred_check
      _
    $region23: #{tpu_custom_call.1} parent=1 // pred_check_branch
      %95 = sbr.rel (0) target = $region25
    $region24: #{tpu_custom_call.1} parent=1 // pred_region
      %97 = vsyncadd [#allocation4], 0
      %s98 = sshll.u32 [#allocation7], 4
      %s99 = int_to_ptr.vmem [resolvable:$true] %s98
      %s100 = sshll.u32 %s3, 4
      %s101 = int_to_ptr.hbm [resolvable:$true] %s100
      %106 = dma.vmem_to_hbm [thread:$0]  %s99, 256, %s101, [#allocation4], 128, 128, 8
    $region25: #{tpu_custom_call.1} parent=1 // pred_fallthru
      _
    // Predicated region
    $region26: #{tpu_custom_call.1} parent=1 // pred_check
      _
    $region27: #{tpu_custom_call.1} parent=1 // pred_check_branch
      %108 = sbr.rel (0) target = $region29
    $region28: #{tpu_custom_call.1} parent=1 // pred_region
      %110 = dma.done [#allocation4], 256
    $region29: #{tpu_custom_call.1} parent=1 // pred_fallthru
      _
    %111 = vsyncpa [#allocation3], 1
    %112 = vsyncpa [#allocation6], 1
    %113 = vsyncpa [#allocation4], 1

</llo_original>
